<compile_context>
chip_gen: v7x
topology: tpu7x:2x2x1
jax: 0.10.0
libtpu: 0.0.40
codegen_flags: <defaults>
</compile_context>

<pallas_src>
import jax
import jax.numpy as jnp
from jax.experimental import pallas as pl
from jax.experimental.pallas import tpu as pltpu


def _round_up(x, m):
    return ((x + m - 1) // m) * m


def _make_probe_kernel(seq_len, seq_tile, mask_last_tile):
    def kernel(x_ref, w_ref, out_ref, acc_ref):
        s = pl.program_id(1)

        @pl.when(s == 0)
        def _init():
            acc_ref[...] = jnp.zeros_like(acc_ref)

        x = x_ref[...]                                       # (TB, TS, H) f32
        if mask_last_tile:
            # Zero out rows past the true sequence length on the ragged tile.
            row = s * seq_tile + jax.lax.broadcasted_iota(jnp.int32, x.shape, 1)
            x = jnp.where(row < seq_len, x, 0.0)
        acc_ref[...] += jnp.sum(x, axis=1)                   # partial seq sum

        @pl.when(s == pl.num_programs(1) - 1)
        def _finalize():
            # 1/S is folded into w, so this single MXU pass yields
            # mean(batch, 1) @ [vectors_d | vectors_c | vectors_u] (padded).
            out_ref[...] = jnp.dot(
                acc_ref[...], w_ref[...], preferred_element_type=jnp.float32
            )

    return kernel


def code_sum_drl_probe_forward(batch, vectors_d, vectors_c, vectors_u):
    """batch: (B, S, H); vectors_*: (H, L_*). Returns (ds, cs, us)."""
    B, S, H = batch.shape
    Ld, Lc, Lu = vectors_d.shape[1], vectors_c.shape[1], vectors_u.shape[1]
    Ltot = Ld + Lc + Lu
    Lpad = _round_up(Ltot, 128)

    # Fuse the three label-vector matrices into one lane-aligned weight matrix
    # and fold the 1/S mean scaling into it (absorbed by the MXU pass).
    w = jnp.concatenate(
        [vectors_d, vectors_c, vectors_u], axis=1
    ).astype(jnp.float32) * (1.0 / S)
    w = jnp.pad(w, ((0, 0), (0, Lpad - Ltot)))

    # Sequence tile sized so the double-buffered input stream stays far below
    # v7x's 64 MiB VMEM (~4 MiB per tile, x2 buffers).
    seq_budget_bytes = 4 * 1024 * 1024
    ts = max(1, seq_budget_bytes // max(1, B * H * 4))
    if ts >= S:
        ts = S                                   # whole sequence fits in a tile
    else:
        ts = max(8, (ts // 8) * 8)               # sublane-aligned tile

    # Batch tile: leading "parallel" grid axis (sharded across v7x's 2 TCs).
    if B <= 8:
        tb = B
    else:
        tb = min(B, 128)
        tb -= tb % 8

    grid = (pl.cdiv(B, tb), pl.cdiv(S, ts))
    mask_last = (S % ts) != 0

    kernel = _make_probe_kernel(S, ts, mask_last)

    out = pl.pallas_call(
        kernel,
        grid=grid,
        in_specs=[
            pl.BlockSpec((tb, ts, H), lambda b, s: (b, s, 0)),
            pl.BlockSpec((H, Lpad), lambda b, s: (0, 0)),
        ],
        out_specs=pl.BlockSpec((tb, Lpad), lambda b, s: (b, 0)),
        out_shape=jax.ShapeDtypeStruct((B, Lpad), jnp.float32),
        scratch_shapes=[pltpu.VMEM((tb, H), jnp.float32)],
        compiler_params=pltpu.CompilerParams(
            dimension_semantics=("parallel", "arbitrary"),
            vmem_limit_bytes=32 * 1024 * 1024,
        ),
    )(batch.astype(jnp.float32), w)

    ds = out[:, :Ld]
    cs = out[:, Ld:Ld + Lc]
    us = out[:, Ld + Lc:Ltot]
    return ds, cs, us


def init_params(key, probe_rank, hidden_dim, n_d, n_c, n_u):
    """Deterministic uniform(-0.05, 0.05) init, mirroring nn.init.uniform_."""
    k_proj, k_d, k_c, k_u = jax.random.split(key, 4)
    proj = jax.random.uniform(k_proj, (hidden_dim, probe_rank), jnp.float32, -0.05, 0.05)
    vectors_d = jax.random.uniform(k_d, (probe_rank, n_d), jnp.float32, -0.05, 0.05)
    vectors_c = jax.random.uniform(k_c, (probe_rank, n_c), jnp.float32, -0.05, 0.05)
    vectors_u = jax.random.uniform(k_u, (probe_rank, n_u), jnp.float32, -0.05, 0.05)
    # proj is unused in forward() — kept only to match the module's parameters.
    return proj, vectors_d, vectors_c, vectors_u


if __name__ == "__main__":
    # Small, forward-consistent shapes. probe_rank == hidden_dim is required by
    # the original forward (pooled has hidden_dim columns, vectors_* have
    # probe_rank rows).
    B, S = 2, 8
    hidden_dim = 32
    probe_rank = 32
    n_d, n_c, n_u = 16, 24, 8

    key = jax.random.PRNGKey(0)
    k_batch, k_params = jax.random.split(key)
    batch = jax.random.normal(k_batch, (B, S, hidden_dim), jnp.float32)
    proj, vectors_d, vectors_c, vectors_u = init_params(
        k_params, probe_rank, hidden_dim, n_d, n_c, n_u
    )

    ds, cs, us = code_sum_drl_probe_forward(batch, vectors_d, vectors_c, vectors_u)
    jax.block_until_ready((ds, cs, us))

    # Reference check against plain JAX (same semantics as the PyTorch forward).
    pooled = jnp.mean(batch, axis=1)
    ref_d = pooled @ vectors_d
    ref_c = pooled @ vectors_c
    ref_u = pooled @ vectors_u
    assert ds.shape == (B, n_d) and cs.shape == (B, n_c) and us.shape == (B, n_u)
    assert jnp.allclose(ds, ref_d, atol=1e-5)
    assert jnp.allclose(cs, ref_c, atol=1e-5)
    assert jnp.allclose(us, ref_u, atol=1e-5)

    print("KERNEL_OK")
</pallas_src>

<mosaic_0001>
module attributes {stable_mosaic.version = 11 : i64} {
  func.func @kernel(%arg0: i32, %arg1: i32, %arg2: memref<2x8x32xf32, #tpu.memory_space<vmem>>, %arg3: memref<32x128xf32, #tpu.memory_space<vmem>>, %arg4: memref<2x128xf32, #tpu.memory_space<vmem>>, %arg5: memref<2x32xf32, #tpu.memory_space<vmem>>) attributes {dimension_semantics = [#tpu.dimension_semantics<parallel>, #tpu.dimension_semantics<arbitrary>], iteration_bounds = array<i64: 1, 1>, scalar_prefetch = 0 : i64, scratch_operands = 1 : i64, tpu.core_type = #tpu.core_type<tc>, window_params = [{transform_indices = @transform_0, window_bounds = array<i64: 2, 8, 32>}, {pipeline_mode = #tpu.pipeline_mode<synchronous>, transform_indices = @transform_1, window_bounds = array<i64: 32, 128>}, {transform_indices = @transform_2, window_bounds = array<i64: 2, 128>}]} {
    %c0_i32 = arith.constant 0 : i32
    %0 = arith.cmpi eq, %arg1, %c0_i32 : i32
    %1 = arith.extui %0 : i1 to i32
    %c0_i32_0 = arith.constant 0 : i32
    %2 = arith.cmpi ne, %1, %c0_i32_0 : i32
    scf.if %2 {
      %cst_9 = arith.constant 0.000000e+00 : f32
      %11 = vector.broadcast %cst_9 : f32 to vector<2x32xf32>
      %c0_10 = arith.constant 0 : index
      %c0_11 = arith.constant 0 : index
      %12 = vector.load %arg5[%c0_10, %c0_11] : memref<2x32xf32, #tpu.memory_space<vmem>>, vector<2x32xf32>
      tpu.vector_store %arg5[%c0_10, %c0_11], %11 {strides = array<i32>} : memref<2x32xf32, #tpu.memory_space<vmem>>, vector<2x32xf32>,
    } else {
    }
    %c0 = arith.constant 0 : index
    %c0_1 = arith.constant 0 : index
    %c0_2 = arith.constant 0 : index
    %3 = vector.load %arg2[%c0, %c0_1, %c0_2] : memref<2x8x32xf32, #tpu.memory_space<vmem>>, vector<2x8x32xf32>
    %c0_3 = arith.constant 0 : index
    %c0_4 = arith.constant 0 : index
    %4 = vector.load %arg5[%c0_3, %c0_4] : memref<2x32xf32, #tpu.memory_space<vmem>>, vector<2x32xf32>
    %cst = arith.constant dense<0.000000e+00> : vector<2x32xf32>
    %5 = vector.multi_reduction <add>, %3, %cst [1] : vector<2x8x32xf32> to vector<2x32xf32>
    %6 = arith.addf %4, %5 : vector<2x32xf32>
    %c0_5 = arith.constant 0 : index
    %c0_6 = arith.constant 0 : index
    %7 = vector.load %arg5[%c0_5, %c0_6] : memref<2x32xf32, #tpu.memory_space<vmem>>, vector<2x32xf32>
    tpu.vector_store %arg5[%c0_5, %c0_6], %6 {strides = array<i32>} : memref<2x32xf32, #tpu.memory_space<vmem>>, vector<2x32xf32>,
    %c0_i32_7 = arith.constant 0 : i32
    %8 = arith.cmpi eq, %arg1, %c0_i32_7 : i32
    %9 = arith.extui %8 : i1 to i32
    %c0_i32_8 = arith.constant 0 : i32
    %10 = arith.cmpi ne, %9, %c0_i32_8 : i32
    scf.if %10 {
      %c0_9 = arith.constant 0 : index
      %c0_10 = arith.constant 0 : index
      %11 = vector.load %arg5[%c0_9, %c0_10] : memref<2x32xf32, #tpu.memory_space<vmem>>, vector<2x32xf32>
      %c0_11 = arith.constant 0 : index
      %c0_12 = arith.constant 0 : index
      %12 = vector.load %arg3[%c0_11, %c0_12] : memref<32x128xf32, #tpu.memory_space<vmem>>, vector<32x128xf32>
      %cst_13 = arith.constant dense<0.000000e+00> : vector<2x128xf32>
      %13 = tpu.matmul %11, %12, %cst_13 {dimension_numbers = #tpu.dot_dimension_numbers<[1], [0], [0], [1], [0, 0, 1, 1], [], []>} : vector<2x32xf32>, vector<32x128xf32>, vector<2x128xf32> -> vector<2x128xf32>
      %c0_14 = arith.constant 0 : index
      %c0_15 = arith.constant 0 : index
      %14 = vector.load %arg4[%c0_14, %c0_15] : memref<2x128xf32, #tpu.memory_space<vmem>>, vector<2x128xf32>
      tpu.vector_store %arg4[%c0_14, %c0_15], %13 {strides = array<i32>} : memref<2x128xf32, #tpu.memory_space<vmem>>, vector<2x128xf32>,
    } else {
    }
    return
  }
  func.func @transform_0(%arg0: i32, %arg1: i32) -> (i32, i32, i32) {
    %c0_i32 = arith.constant 0 : i32
    %c0_i32_0 = arith.constant 0 : i32
    return %arg0, %arg1, %c0_i32 : i32, i32, i32
  }
  func.func @transform_1(%arg0: i32, %arg1: i32) -> (i32, i32) {
    %c0_i32 = arith.constant 0 : i32
    %c0_i32_0 = arith.constant 0 : i32
    %c0_i32_1 = arith.constant 0 : i32
    return %c0_i32, %c0_i32_0 : i32, i32
  }
  func.func @transform_2(%arg0: i32, %arg1: i32) -> (i32, i32) {
    %c0_i32 = arith.constant 0 : i32
    %c0_i32_0 = arith.constant 0 : i32
    return %arg0, %c0_i32 : i32, i32
  }
}

</mosaic_0001>

<llo_original>
// kernel: tpu_custom_call.1
$region0: #{tpu_custom_call.1}
  #allocation0 [shape = 'u32[]', space=smem, size = 0x4, offset = 0x4, fixed_abs, tag = 'smem constant byte address 0x4 - core index']
  #allocation1 [shape = 'u32[144,128]{1,0:T(1,128)}', space=vmem, size = 0x12000, scoped, tag = 'internal scratch']
  #allocation2 [shape = 'f32[2,32]{1,0:T(2,128)}', space=vmem, size = 0x400, scoped, tag = 'scratch operand']
  %s0 = inlined_call_operand.hbm [shape: f32[2,8,32], index: 0, kind: input, shape index: {}]
  %s1 = inlined_call_operand.hbm [shape: f32[32,128], index: 1, kind: input, shape index: {}]
  %s2 = inlined_call_operand.hbm [shape: f32[2,128], index: 2, kind: output, shape index: {}]
  %s3 = sld [smem:[#allocation0]]
  $region34: #{tpu_custom_call.1} parent=0
    _
  %s5 = ssub.s32 1, %s3
  %s6 = scalar_select 0, %s5, %s3
  $region1: #{tpu_custom_call.1} parent=0
    #allocation3 [shape = 'u8[8192]{0}', space=vmem, size = 0x2000, scoped, tag = 'input window, operand 0, single buffered']
    #allocation4 [shape = 's32[1]{0}', space=sflag, size = 0x4, scoped, tag = 'scoped memory for tpu_custom_call.1']
    #allocation5 [shape = 's32[1]{0}', space=sflag, size = 0x4, scoped, tag = 'scoped memory for tpu_custom_call.1']
    #allocation6 [shape = 'u8[16384]{0}', space=vmem, size = 0x4000, scoped, tag = 'input window, operand 1, single buffered']
    #allocation7 [shape = 's32[1]{0}', space=sflag, size = 0x4, scoped, tag = 'scoped memory for tpu_custom_call.1']
    #allocation8 [shape = 'u8[1024]{0}', space=vmem, size = 0x400, scoped, tag = 'output window, operand 0, single buffered']
    %7 = vsyncpa [#allocation4], 0
    %8 = vsyncpa [#allocation7], 0
    %9 = vsyncpa [#allocation5], 0
    // Predicated region
    $region2: #{tpu_custom_call.1} parent=1 // pred_check
      _
    $region3: #{tpu_custom_call.1} parent=1 // pred_check_branch
      %11 = sbr.rel (0) target = $region5
    $region4: #{tpu_custom_call.1} parent=1 // pred_region
      %s13 = ssub.s32 256, 256
      %14 = vsyncadd [#allocation4], %s13
      %s15 = sshll.u32 [#allocation3], 4
      %s16 = int_to_ptr.vmem [resolvable:$true] %s15
      %21 = dma.hbm_to_vmem [thread:$0]  %s0, 256, %s16, [#allocation4], 128, 128, 8
    $region5: #{tpu_custom_call.1} parent=1 // pred_fallthru
      _
    // Predicated region
    $region6: #{tpu_custom_call.1} parent=1 // pred_check
      _
    $region7: #{tpu_custom_call.1} parent=1 // pred_check_branch
      %23 = sbr.rel (0) target = $region9
    $region8: #{tpu_custom_call.1} parent=1 // pred_region
      %s25 = ssub.s32 512, 512
      %26 = vsyncadd [#allocation7], %s25
      %s27 = sshll.u32 [#allocation6], 4
      %s28 = int_to_ptr.vmem [resolvable:$true] %s27
      %33 = dma.hbm_to_vmem [thread:$0]  %s1, 512, %s28, [#allocation7], 128, 128, 8
    $region9: #{tpu_custom_call.1} parent=1 // pred_fallthru
      _
    // Predicated region
    $region10: #{tpu_custom_call.1} parent=1 // pred_check
      _
    $region11: #{tpu_custom_call.1} parent=1 // pred_check_branch
      %35 = sbr.rel (0) target = $region13
    $region12: #{tpu_custom_call.1} parent=1 // pred_region
      %36 = dma.done [#allocation4], 256
    $region13: #{tpu_custom_call.1} parent=1 // pred_fallthru
      _
    // Predicated region
    $region14: #{tpu_custom_call.1} parent=1 // pred_check
      _
    $region15: #{tpu_custom_call.1} parent=1 // pred_check_branch
      %38 = sbr.rel (0) target = $region17
    $region16: #{tpu_custom_call.1} parent=1 // pred_region
      %39 = dma.done [#allocation7], 512
    $region17: #{tpu_custom_call.1} parent=1 // pred_fallthru
      _
    %p40 = scmp.eq.s32.totalorder 0, 0
    // Predicated region
    $region18: #{tpu_custom_call.1} parent=1 // pred_check
      %p41 = pneg %p40
    $region19: #{tpu_custom_call.1} parent=1 // pred_check_branch
      %43 = sbr.rel (%p41) target = $region21
    $region20: #{tpu_custom_call.1} parent=1 // pred_region
      %vm44 = vcmask 254976
      %45 = vst.msk [vmem:[#allocation2] sm:$0x3] %vm44, 0.0
    $region21: #{tpu_custom_call.1} parent=1 // pred_fallthru
      _
    %v46 = vld [vmem:[#allocation3] sm:$0xff]
    %v47 = vld [vmem:[#allocation3 + $0x8] sm:$0xff]
    %v48 = vld [vmem:[#allocation2] sm:$0x3]
    %vm49 = vcmask 261120
    %v50 = vsel %vm49, %v46, 0.0
    %v51 = vrot.slane %v50, 4
    %v52 = vadd.f32 %v50, %v51
    %v53 = vrot.slane %v52, 2
    %v54 = vadd.f32 %v52, %v53
    %v55 = vrot.slane %v54, 1
    %v56 = vadd.f32 %v54, %v55
    %v57 = vsel %vm49, %v47, 0.0
    %v58 = vrot.slane %v57, 4
    %v59 = vadd.f32 %v57, %v58
    %v60 = vrot.slane %v59, 2
    %v61 = vadd.f32 %v59, %v60
    %v62 = vrot.slane %v61, 1
    %v63 = vadd.f32 %v61, %v62
    %vm66 = vcmask 1041409
    %v67 = vsel %vm66, %v63, %v56
    %v69 = vadd.f32 %v48, %v67
    %vm70 = vcmask 254976
    %71 = vst.msk [vmem:[#allocation2] sm:$0x3] %vm70, %v69
    // Predicated region
    $region22: #{tpu_custom_call.1} parent=1 // pred_check
      %p72 = pneg %p40
    $region23: #{tpu_custom_call.1} parent=1 // pred_check_branch
      %74 = sbr.rel (%p72) target = $region25
    $region24: #{tpu_custom_call.1} parent=1 // pred_region
      %v75 = vld [vmem:[#allocation2] sm:$0x3]
      %v76 = vld [vmem:[#allocation6] sm:$0xff]
      %v77 = vld [vmem:[#allocation6 + $0x8] sm:$0xff]
      %v78 = vld [vmem:[#allocation6 + $0x10] sm:$0xff]
      %v79 = vld [vmem:[#allocation6 + $0x18] sm:$0xff]
      %v81 = vsel %vm49, %v75, 0
      %83 = vmatprep.subr.mxu0 0.0
      %84 = vmatpush1.msra.mxu0 %v76
      %85 = vmatprep.subr.mxu0 0.0
      %86 = vmatpush1.msra.mxu0 %v77
      %87 = vmatprep.subr.mxu0 0.0
      %88 = vmatpush1.msra.mxu0 %v78
      %89 = vmatprep.subr.mxu0 0.0
      %90 = vmatpush1.msra.mxu0 %v79
      %91 = vmatprep.subr.mxu0 0.0
      %92 = vmatpush1.msra.mxu0 0.0
      %93 = vmatprep.subr.mxu0 0.0
      %94 = vmatpush1.msra.mxu0 0.0
      %95 = vmatprep.subr.mxu0 0.0
      %96 = vmatpush1.msra.mxu0 0.0
      %97 = vmatprep.subr.mxu0 0.0
      %98 = vmatpush1.msra.mxu0 0.0
      %99 = vmatprep.subr.mxu0 0.0
      %100 = vmatpush1.msra.mxu0 0.0
      %101 = vmatprep.subr.mxu0 0.0
      %102 = vmatpush1.msra.mxu0 0.0
      %103 = vmatprep.subr.mxu0 0.0
      %104 = vmatpush1.msra.mxu0 0.0
      %105 = vmatprep.subr.mxu0 0.0
      %106 = vmatpush1.msra.mxu0 0.0
      %107 = vmatprep.subr.mxu0 0.0
      %108 = vmatpush1.msra.mxu0 0.0
      %109 = vmatprep.subr.mxu0 0.0
      %110 = vmatpush1.msra.mxu0 0.0
      %111 = vmatprep.subr.mxu0 0.0
      %112 = vmatpush1.msra.mxu0 0.0
      %113 = vmatprep.subr.mxu0 0.0
      %114 = vmatpush1.msra.mxu0 0.0
      %115 = vmatprep.subr.mxu0 0.0
      %116 = vmatpush1.msra.mxu0 0.0
      %117 = vmatprep.subr.mxu0 0.0
      %118 = vmatpush1.msra.mxu0 0.0
      %119 = vmatprep.subr.mxu0 0.0
      %120 = vmatpush1.msra.mxu0 0.0
      %121 = vmatprep.subr.mxu0 0.0
      %122 = vmatpush1.msra.mxu0 0.0
      %123 = vmatprep.subr.mxu0 0.0
      %124 = vmatpush1.msra.mxu0 0.0
      %125 = vmatprep.subr.mxu0 0.0
      %126 = vmatpush1.msra.mxu0 0.0
      %127 = vmatprep.subr.mxu0 0.0
      %128 = vmatpush1.msra.mxu0 0.0
      %129 = vmatprep.subr.mxu0 0.0
      %130 = vmatpush1.msra.mxu0 0.0
      %131 = vmatprep.subr.mxu0 0.0
      %132 = vmatpush1.msra.mxu0 0.0
      %133 = vmatprep.subr.mxu0 0.0
      %134 = vmatpush1.msra.mxu0 0.0
      %135 = vmatprep.subr.mxu0 0.0
      %136 = vmatpush1.msra.mxu0 0.0
      %137 = vmatprep.subr.mxu0 0.0
      %138 = vmatpush1.msra.mxu0 0.0
      %139 = vmatprep.subr.mxu0 0.0
      %140 = vmatpush1.msra.mxu0 0.0
      %141 = vmatprep.subr.mxu0 0.0
      %142 = vmatpush1.msra.mxu0 0.0
      %143 = vmatprep.subr.mxu0 0.0
      %144 = vmatpush1.msra.mxu0 0.0
      %145 = vmatprep.subr.mxu0 0.0
      %146 = vmatpush1.msra.mxu0 0.0
      %147 = vmatprep.mubr.f32.mxu0 0.0
      %148 = vmatmul.mubr.f32.gmra.mrb[0].mxu0 %v81
      %v149 = vpop.f32.mrb[0].mxu0
      %v150 = vadd.f32 0.0, %v149
      %v151 = vpop.f32.mrb[0].mxu0
      %152 = vdwg.mxu0
      %153 = vst [vmem:[#allocation8] sm:$0x3] %v150
    $region25: #{tpu_custom_call.1} parent=1 // pred_fallthru
      _
    // Predicated region
    $region26: #{tpu_custom_call.1} parent=1 // pred_check
      _
    $region27: #{tpu_custom_call.1} parent=1 // pred_check_branch
      %155 = sbr.rel (0) target = $region29
    $region28: #{tpu_custom_call.1} parent=1 // pred_region
      %s157 = ssub.s32 32, 32
      %158 = vsyncadd [#allocation5], %s157
      %s160 = sshll.u32 [#allocation8], 4
      %s161 = int_to_ptr.vmem [resolvable:$true] %s160
      %163 = dma.vmem_to_hbm [thread:$0]  %s161, 32, %s2, [#allocation5]
    $region29: #{tpu_custom_call.1} parent=1 // pred_fallthru
      _
    // Predicated region
    $region30: #{tpu_custom_call.1} parent=1 // pred_check
      _
    $region31: #{tpu_custom_call.1} parent=1 // pred_check_branch
      %165 = sbr.rel (0) target = $region33
    $region32: #{tpu_custom_call.1} parent=1 // pred_region
      %166 = dma.done [#allocation5], 32
    $region33: #{tpu_custom_call.1} parent=1 // pred_fallthru
      _
    %167 = vsyncpa [#allocation4], 1
    %168 = vsyncpa [#allocation7], 1
    %169 = vsyncpa [#allocation5], 1

</llo_original>
